<compile_context>
chip_gen: v6e
topology: v6e:2x2x1
jax: 0.10.0
libtpu: 0.0.40
codegen_flags: <defaults>
</compile_context>

<pallas_src>
import jax
import jax.numpy as jnp
from jax import lax
from jax.experimental import pallas as pl
from jax.experimental.pallas import tpu as pltpu


_TARGET_BLOCK_ELEMS = 1024 * 1024   # ~4 MiB f32 per input block
_MAX_LANES = 1024                   # cap on lane width (multiple of 128)
_UNROLL = 4                         # sublane-groups per fori_loop iteration


def _cdiv(a, b):
    return -(-a // b)


def _make_bce_kernel(*, tr, lanes, acc_rows, rows_per_split, n_rows,
                     need_mask, unroll):
    """Build the kernel for fixed (static) tiling parameters."""
    n_groups = tr // acc_rows          # acc_rows-high sublane groups per block
    n_macro = n_groups // unroll
    n_rem = n_groups - n_macro * unroll

    def kernel(p_ref, y_ref, out_ref, acc_ref):
        c = pl.program_id(0)           # megacore split of the row-blocks
        i = pl.program_id(1)           # row-block within the split (reduction)

        @pl.when(i == 0)
        def _init():
            acc_ref[...] = jnp.zeros_like(acc_ref)

        blk = c * rows_per_split + i   # logical (unclamped) row-block index
        row0 = blk * tr                # first global row covered by this block

        def group_contrib(r_start, masked):
            pg = p_ref[pl.ds(r_start, acc_rows), :].astype(jnp.float32)
            yg = y_ref[pl.ds(r_start, acc_rows), :].astype(jnp.float32)
            # PyTorch BCELoss clamps the log terms at -100.
            log_p = jnp.maximum(jnp.log(pg), -100.0)
            log_1mp = jnp.maximum(jnp.log1p(-pg), -100.0)
            # 3-op form of y*log(p) + (1-y)*log(1-p); sign applied in wrapper.
            elem = log_1mp + yg * (log_p - log_1mp)
            if masked:
                rid = row0 + r_start + lax.broadcasted_iota(
                    jnp.int32, (acc_rows, 1), 0)
                # select (not multiply): log(garbage) in padded rows may be NaN.
                elem = jnp.where(rid < n_rows, elem, 0.0)
            return elem

        def accumulate_block(masked):
            part = jnp.zeros((acc_rows, lanes), jnp.float32)
            if n_macro > 0:
                def body(m, acc):
                    base = pl.multiple_of(m * (unroll * acc_rows), acc_rows)
                    for u in range(unroll):                 # static unroll
                        acc = acc + group_contrib(base + u * acc_rows, masked)
                    return acc
                part = lax.fori_loop(0, n_macro, body, part)
            for u in range(n_rem):                          # static tail groups
                part = part + group_contrib(
                    (n_macro * unroll + u) * acc_rows, masked)
            acc_ref[...] += part                            # once per block

        if need_mask:
            is_edge = row0 + tr > n_rows   # ragged last block or fully-OOB block
            @pl.when(jnp.logical_not(is_edge))
            def _fast():
                accumulate_block(masked=False)

            @pl.when(is_edge)
            def _edge():
                accumulate_block(masked=True)
        else:
            accumulate_block(masked=False)

        @pl.when(i == pl.num_programs(1) - 1)
        def _finalize():
            s = jnp.sum(acc_ref[...])      # single cross-lane reduce per split
            rr = lax.broadcasted_iota(jnp.int32, (8, 128), 0)
            cc = lax.broadcasted_iota(jnp.int32, (8, 128), 1)
            out_ref[...] = jnp.where(jnp.logical_and(rr == 0, cc == 0), s, 0.0)

    return kernel


def bce_loss_pallas(z, p, y, *, block_rows=None, max_lanes=None):
    """Equivalent of Loss.forward(z, p, y): mean BCE over all elements of p/y."""
    del z  # unused, mirrors the reference module
    assert p.shape == y.shape
    total = p.size

    p_flat = jnp.reshape(p, (-1,))
    y_flat = jnp.reshape(y, (-1,))
    n = p_flat.shape[0]

    # Rare path: element count not a multiple of 128 -> pad with the zero-loss
    # filler p = y = 1 (clamped BCE contribution is exactly 0, no mask needed).
    if n % 128 != 0:
        pad = (-n) % 128
        p_flat = jnp.pad(p_flat, (0, pad), constant_values=1.0)
        y_flat = jnp.pad(y_flat, (0, pad), constant_values=1.0)
        n += pad

    # Lane width: largest 128-multiple <= cap dividing n, preferring one that
    # leaves at least 8 rows (full sublane groups).
    cap = _MAX_LANES if max_lanes is None else max(128, (max_lanes // 128) * 128)
    candidates = [c for c in range(cap, 0, -128) if n % c == 0]
    preferred = [c for c in candidates if n // c >= 8]
    lanes = preferred[0] if preferred else candidates[0]
    rows = n // lanes

    p2 = p_flat.reshape(rows, lanes)
    y2 = y_flat.reshape(rows, lanes)

    # Row-block height: multiple of 8, targeting ~_TARGET_BLOCK_ELEMS per block.
    if rows < 8:
        tr = rows
    else:
        tr = (min(_TARGET_BLOCK_ELEMS // lanes, rows) // 8) * 8
        tr = max(8, tr)
        if block_rows is not None:
            tr = max(8, min((block_rows // 8) * 8, tr))
    acc_rows = 8 if tr >= 8 else tr

    row_blocks = _cdiv(rows, tr)
    n_splits = 2 if row_blocks >= 2 else 1
    rows_per_split = _cdiv(row_blocks, n_splits)

    need_mask = (n_splits * rows_per_split * tr != rows)
    needs_clamp = (n_splits * rows_per_split != row_blocks)

    if needs_clamp:
        # Fully-out-of-range row blocks re-read the last valid block; their
        # contribution is zeroed by the in-kernel row mask.
        def in_map(c, i):
            return (jnp.minimum(c * rows_per_split + i, row_blocks - 1), 0)
    else:
        def in_map(c, i):
            return (c * rows_per_split + i, 0)

    kernel = _make_bce_kernel(
        tr=tr, lanes=lanes, acc_rows=acc_rows, rows_per_split=rows_per_split,
        n_rows=rows, need_mask=need_mask, unroll=_UNROLL)

    partials = pl.pallas_call(
        kernel,
        out_shape=jax.ShapeDtypeStruct((n_splits * 8, 128), jnp.float32),
        grid_spec=pltpu.PrefetchScalarGridSpec(
            num_scalar_prefetch=0,
            grid=(n_splits, rows_per_split),
            in_specs=[pl.BlockSpec((tr, lanes), in_map),
                      pl.BlockSpec((tr, lanes), in_map)],
            out_specs=pl.BlockSpec((8, 128), lambda c, i: (c, 0)),
            scratch_shapes=[pltpu.VMEM((acc_rows, lanes), jnp.float32)],
        ),
        compiler_params=pltpu.CompilerParams(
            dimension_semantics=("parallel", "arbitrary"),
            vmem_limit_bytes=32 * 1024 * 1024,
        ),
    )(p2, y2)

    # Kernel accumulates y*log(p) + (1-y)*log1p(-p); apply the BCE sign and the
    # mean over the ORIGINAL element count here.
    return -jnp.sum(partials) / jnp.float32(total)


def _bce_ref(p, y):
    return -jnp.mean(
        y * jnp.maximum(jnp.log(p), -100.0)
        + (1.0 - y) * jnp.maximum(jnp.log1p(-p), -100.0)
    )


if __name__ == "__main__":
    key = jax.random.PRNGKey(0)
    k_z, k_p, k_y = jax.random.split(key, 3)

    batch, latent, features = 16, 32, 256

    # z: latent code (unused by the loss), p: predictions in (0,1), y: targets.
    z = jax.random.normal(k_z, (batch, latent), dtype=jnp.float32)
    p = jax.nn.sigmoid(jax.random.normal(k_p, (batch, features), dtype=jnp.float32))
    y = (jax.random.uniform(k_y, (batch, features)) > 0.5).astype(jnp.float32)

    loss = bce_loss_pallas(z, p, y)
    jax.block_until_ready(loss)
    ref = _bce_ref(p, y)
    assert jnp.allclose(loss, ref, rtol=1e-4, atol=1e-6), (loss, ref)

    # Exercise the unrolled fori_loop fold path (single lane-dense block).
    k_p1, k_y1 = jax.random.split(k_p)
    p1 = jax.nn.sigmoid(jax.random.normal(k_p1, (96, 1024), dtype=jnp.float32))
    y1 = (jax.random.uniform(k_y1, (96, 1024)) > 0.5).astype(jnp.float32)
    l1 = bce_loss_pallas(None, p1, y1)
    jax.block_until_ready(l1)
    assert jnp.allclose(l1, _bce_ref(p1, y1), rtol=1e-4, atol=1e-6), (l1, _bce_ref(p1, y1))

    # Ragged rows + 2-way split + clamped index map (small tiles via overrides).
    k_p2, k_y2 = jax.random.split(k_y)
    p2 = jax.nn.sigmoid(jax.random.normal(k_p2, (20, 256), dtype=jnp.float32))
    y2 = (jax.random.uniform(k_y2, (20, 256)) > 0.5).astype(jnp.float32)
    l2 = bce_loss_pallas(None, p2, y2, block_rows=8, max_lanes=256)
    jax.block_until_ready(l2)
    assert jnp.allclose(l2, _bce_ref(p2, y2), rtol=1e-4, atol=1e-6), (l2, _bce_ref(p2, y2))

    # Non-128-multiple element count (zero-loss lane pad) + soft targets.
    k_p3, k_y3 = jax.random.split(k_p2)
    p3 = jax.nn.sigmoid(jax.random.normal(k_p3, (40, 300), dtype=jnp.float32))
    y3 = jax.random.uniform(k_y3, (40, 300)).astype(jnp.float32)
    l3 = bce_loss_pallas(None, p3, y3)
    jax.block_until_ready(l3)
    assert jnp.allclose(l3, _bce_ref(p3, y3), rtol=1e-4, atol=1e-6), (l3, _bce_ref(p3, y3))

    # bf16 inputs accepted without wrapper upcast (kernel upcasts per group).
    p3b = p3.astype(jnp.bfloat16)
    y3b = y3.astype(jnp.bfloat16)
    l3b = bce_loss_pallas(None, p3b, y3b)
    jax.block_until_ready(l3b)
    ref_b = _bce_ref(p3b.astype(jnp.float32), y3b.astype(jnp.float32))
    assert jnp.allclose(l3b, ref_b, rtol=1e-3, atol=1e-4), (l3b, ref_b)

    print("KERNEL_OK")
</pallas_src>

<mosaic_0001>
module attributes {stable_mosaic.version = 11 : i64} {
  func.func @kernel(%arg0: i32, %arg1: i32, %arg2: memref<8x512xf32, #tpu.memory_space<vmem>>, %arg3: memref<8x512xf32, #tpu.memory_space<vmem>>, %arg4: memref<8x128xf32, #tpu.memory_space<vmem>>, %arg5: memref<8x512xf32, #tpu.memory_space<vmem>>) attributes {dimension_semantics = [#tpu.dimension_semantics<parallel>, #tpu.dimension_semantics<arbitrary>], iteration_bounds = array<i64: 1, 1>, scalar_prefetch = 0 : i64, scratch_operands = 1 : i64, tpu.core_type = #tpu.core_type<tc>, window_params = [{transform_indices = @transform_0, window_bounds = array<i64: 8, 512>}, {transform_indices = @transform_1, window_bounds = array<i64: 8, 512>}, {transform_indices = @transform_2, window_bounds = array<i64: 8, 128>}]} {
    %c0_i32 = arith.constant 0 : i32
    %0 = arith.cmpi eq, %arg1, %c0_i32 : i32
    %1 = arith.extui %0 : i1 to i32
    %c0_i32_0 = arith.constant 0 : i32
    %2 = arith.cmpi ne, %1, %c0_i32_0 : i32
    scf.if %2 {
      %cst_13 = arith.constant 0.000000e+00 : f32
      %24 = vector.broadcast %cst_13 : f32 to vector<8x512xf32>
      %c0_14 = arith.constant 0 : index
      %c0_15 = arith.constant 0 : index
      %25 = vector.load %arg5[%c0_14, %c0_15] : memref<8x512xf32, #tpu.memory_space<vmem>>, vector<8x512xf32>
      tpu.vector_store %arg5[%c0_14, %c0_15], %24 {strides = array<i32>} : memref<8x512xf32, #tpu.memory_space<vmem>>, vector<8x512xf32>,
    } else {
    }
    %cst = arith.constant 0.000000e+00 : f32
    %3 = vector.broadcast %cst : f32 to vector<8x512xf32>
    %c0 = arith.constant 0 : index
    %c0_1 = arith.constant 0 : index
    %4 = vector.load %arg2[%c0, %c0_1] : memref<8x512xf32, #tpu.memory_space<vmem>>, vector<8x512xf32>
    %c0_2 = arith.constant 0 : index
    %c0_3 = arith.constant 0 : index
    %5 = vector.load %arg3[%c0_2, %c0_3] : memref<8x512xf32, #tpu.memory_space<vmem>>, vector<8x512xf32>
    %6 = math.log %4 : vector<8x512xf32>
    %cst_4 = arith.constant -1.000000e+02 : f32
    %7 = vector.broadcast %cst_4 : f32 to vector<8x512xf32>
    %8 = arith.maximumf %6, %7 : vector<8x512xf32>
    %cst_5 = arith.constant 0.000000e+00 : f32
    %9 = vector.broadcast %cst_5 : f32 to vector<8x512xf32>
    %10 = arith.subf %9, %4 : vector<8x512xf32>
    %11 = math.log1p %10 : vector<8x512xf32>
    %cst_6 = arith.constant -1.000000e+02 : f32
    %12 = vector.broadcast %cst_6 : f32 to vector<8x512xf32>
    %13 = arith.maximumf %11, %12 : vector<8x512xf32>
    %14 = arith.subf %8, %13 : vector<8x512xf32>
    %15 = arith.mulf %5, %14 : vector<8x512xf32>
    %16 = arith.addf %13, %15 : vector<8x512xf32>
    %17 = arith.addf %3, %16 : vector<8x512xf32>
    %c0_7 = arith.constant 0 : index
    %c0_8 = arith.constant 0 : index
    %18 = vector.load %arg5[%c0_7, %c0_8] : memref<8x512xf32, #tpu.memory_space<vmem>>, vector<8x512xf32>
    %19 = arith.addf %18, %17 : vector<8x512xf32>
    %c0_9 = arith.constant 0 : index
    %c0_10 = arith.constant 0 : index
    %20 = vector.load %arg5[%c0_9, %c0_10] : memref<8x512xf32, #tpu.memory_space<vmem>>, vector<8x512xf32>
    tpu.vector_store %arg5[%c0_9, %c0_10], %19 {strides = array<i32>} : memref<8x512xf32, #tpu.memory_space<vmem>>, vector<8x512xf32>,
    %c0_i32_11 = arith.constant 0 : i32
    %21 = arith.cmpi eq, %arg1, %c0_i32_11 : i32
    %22 = arith.extui %21 : i1 to i32
    %c0_i32_12 = arith.constant 0 : i32
    %23 = arith.cmpi ne, %22, %c0_i32_12 : i32
    scf.if %23 {
      %c0_13 = arith.constant 0 : index
      %c0_14 = arith.constant 0 : index
      %24 = vector.load %arg5[%c0_13, %c0_14] : memref<8x512xf32, #tpu.memory_space<vmem>>, vector<8x512xf32>
      %25 = vector.shape_cast %24 : vector<8x512xf32> to vector<1x8x512xf32>
      %cst_15 = arith.constant dense<0.000000e+00> : vector<1xf32>
      %26 = vector.multi_reduction <add>, %25, %cst_15 [1, 2] : vector<1x8x512xf32> to vector<1xf32>
      %27 = vector.shape_cast %26 : vector<1xf32> to vector<1x1x1xf32>
      %28 = vector.extract %27[0, 0, 0] : f32 from vector<1x1x1xf32>
      %29 = tpu.iota {dimensions = array<i32: 0>} : vector<8x128xi32>
      %30 = tpu.iota {dimensions = array<i32: 1>} : vector<8x128xi32>
      %c0_i32_16 = arith.constant 0 : i32
      %31 = vector.broadcast %c0_i32_16 : i32 to vector<8x128xi32>
      %32 = arith.cmpi eq, %29, %31 : vector<8x128xi32>
      %c0_i32_17 = arith.constant 0 : i32
      %33 = vector.broadcast %c0_i32_17 : i32 to vector<8x128xi32>
      %34 = arith.cmpi eq, %30, %33 : vector<8x128xi32>
      %35 = arith.andi %32, %34 : vector<8x128xi1>
      %cst_18 = arith.constant 0.000000e+00 : f32
      %36 = vector.broadcast %28 : f32 to vector<8x128xf32>
      %37 = vector.broadcast %cst_18 : f32 to vector<8x128xf32>
      %38 = arith.select %35, %36, %37 : vector<8x128xi1>, vector<8x128xf32>
      %c0_19 = arith.constant 0 : index
      %c0_20 = arith.constant 0 : index
      %39 = vector.load %arg4[%c0_19, %c0_20] : memref<8x128xf32, #tpu.memory_space<vmem>>, vector<8x128xf32>
      tpu.vector_store %arg4[%c0_19, %c0_20], %38 {strides = array<i32>} : memref<8x128xf32, #tpu.memory_space<vmem>>, vector<8x128xf32>,
    } else {
    }
    return
  }
  func.func @transform_0(%arg0: i32, %arg1: i32) -> (i32, i32) {
    %c1_i32 = arith.constant 1 : i32
    %0 = arith.muli %arg0, %c1_i32 : i32
    %1 = arith.addi %0, %arg1 : i32
    %c0_i32 = arith.constant 0 : i32
    %c0_i32_0 = arith.constant 0 : i32
    return %1, %c0_i32 : i32, i32
  }
  func.func @transform_1(%arg0: i32, %arg1: i32) -> (i32, i32) {
    %c1_i32 = arith.constant 1 : i32
    %0 = arith.muli %arg0, %c1_i32 : i32
    %1 = arith.addi %0, %arg1 : i32
    %c0_i32 = arith.constant 0 : i32
    %c0_i32_0 = arith.constant 0 : i32
    return %1, %c0_i32 : i32, i32
  }
  func.func @transform_2(%arg0: i32, %arg1: i32) -> (i32, i32) {
    %c0_i32 = arith.constant 0 : i32
    %c0_i32_0 = arith.constant 0 : i32
    return %arg0, %c0_i32 : i32, i32
  }
}

</mosaic_0001>

<llo_original>
// kernel: tpu_custom_call.1
$region0: #{tpu_custom_call.1}
  #allocation0 [shape = 'u32[]', space=smem, size = 0x4, offset = 0x4, fixed_abs, tag = 'smem constant byte address 0x4 - core index']
  #allocation1 [shape = 'u32[144,128]{1,0:T(1,128)}', space=vmem, size = 0x12000, scoped, tag = 'internal scratch']
  #allocation2 [shape = 'f32[8,512]{1,0:T(8,128)}', space=vmem, size = 0x4000, scoped, tag = 'scratch operand']
  %s0 = inlined_call_operand.hbm [shape: f32[8,512], index: 0, kind: input, shape index: {}]
  %s1 = inlined_call_operand.hbm [shape: f32[8,512], index: 1, kind: input, shape index: {}]
  %s2 = inlined_call_operand.hbm [shape: f32[8,128], index: 2, kind: output, shape index: {}]
  %s3 = sld [smem:[#allocation0]]
  $region34: #{tpu_custom_call.1} parent=0
    _
  %s5 = ssub.s32 1, %s3
  %s6 = scalar_select 0, %s5, %s3
  $region1: #{tpu_custom_call.1} parent=0
    #allocation3 [shape = 'u8[16384]{0}', space=vmem, size = 0x4000, scoped, tag = 'input window, operand 0, single buffered']
    #allocation4 [shape = 's32[1]{0}', space=sflag, size = 0x4, scoped, tag = 'scoped memory for tpu_custom_call.1']
    #allocation5 [shape = 's32[1]{0}', space=sflag, size = 0x4, scoped, tag = 'scoped memory for tpu_custom_call.1']
    #allocation6 [shape = 'u8[16384]{0}', space=vmem, size = 0x4000, scoped, tag = 'input window, operand 1, single buffered']
    #allocation7 [shape = 's32[1]{0}', space=sflag, size = 0x4, scoped, tag = 'scoped memory for tpu_custom_call.1']
    #allocation8 [shape = 'u8[4096]{0}', space=vmem, size = 0x1000, scoped, tag = 'output window, operand 0, single buffered']
    %7 = vsyncpa [#allocation4], 0
    %8 = vsyncpa [#allocation7], 0
    %9 = vsyncpa [#allocation5], 0
    // Predicated region
    $region2: #{tpu_custom_call.1} parent=1 // pred_check
      _
    $region3: #{tpu_custom_call.1} parent=1 // pred_check_branch
      %11 = sbr.rel (0) target = $region5
    $region4: #{tpu_custom_call.1} parent=1 // pred_region
      %s12 = sadd.s32 0, 0
      %s14 = ssub.s32 512, 512
      %15 = vsyncadd [#allocation4], %s14
      %s16 = smul.addr %s12, 4
      %s17 = smul.addr %s16, 128
      %s18 = scalar_lea.hbm %s0, %s17
      %s20 = sshll.u32 [#allocation3], 4
      %s21 = int_to_ptr.vmem [resolvable:$true] %s20
      %23 = dma.hbm_to_vmem [thread:$0]  %s18, 512, %s21, [#allocation4]
    $region5: #{tpu_custom_call.1} parent=1 // pred_fallthru
      _
    // Predicated region
    $region6: #{tpu_custom_call.1} parent=1 // pred_check
      _
    $region7: #{tpu_custom_call.1} parent=1 // pred_check_branch
      %25 = sbr.rel (0) target = $region9
    $region8: #{tpu_custom_call.1} parent=1 // pred_region
      %s26 = sadd.s32 0, 0
      %s28 = ssub.s32 512, 512
      %29 = vsyncadd [#allocation7], %s28
      %s30 = smul.addr %s26, 4
      %s31 = smul.addr %s30, 128
      %s32 = scalar_lea.hbm %s1, %s31
      %s34 = sshll.u32 [#allocation6], 4
      %s35 = int_to_ptr.vmem [resolvable:$true] %s34
      %37 = dma.hbm_to_vmem [thread:$0]  %s32, 512, %s35, [#allocation7]
    $region9: #{tpu_custom_call.1} parent=1 // pred_fallthru
      _
    // Predicated region
    $region10: #{tpu_custom_call.1} parent=1 // pred_check
      _
    $region11: #{tpu_custom_call.1} parent=1 // pred_check_branch
      %39 = sbr.rel (0) target = $region13
    $region12: #{tpu_custom_call.1} parent=1 // pred_region
      %40 = dma.done [#allocation4], 512
    $region13: #{tpu_custom_call.1} parent=1 // pred_fallthru
      _
    // Predicated region
    $region14: #{tpu_custom_call.1} parent=1 // pred_check
      _
    $region15: #{tpu_custom_call.1} parent=1 // pred_check_branch
      %42 = sbr.rel (0) target = $region17
    $region16: #{tpu_custom_call.1} parent=1 // pred_region
      %43 = dma.done [#allocation7], 512
    $region17: #{tpu_custom_call.1} parent=1 // pred_fallthru
      _
    %s44 = sadd.s32 0, 0
    %s45 = sadd.s32 0, 0
    %p46 = scmp.eq.s32.totalorder 0, 0
    // Predicated region
    $region18: #{tpu_custom_call.1} parent=1 // pred_check
      %p47 = pneg %p46
    $region19: #{tpu_custom_call.1} parent=1 // pred_check_branch
      %49 = sbr.rel (%p47) target = $region21
    $region20: #{tpu_custom_call.1} parent=1 // pred_region
      %50 = vst [vmem:[#allocation2] sm:$0xff] 0.0
      %51 = vst [vmem:[#allocation2 + $0x8] sm:$0xff] 0.0
      %52 = vst [vmem:[#allocation2 + $0x10] sm:$0xff] 0.0
      %53 = vst [vmem:[#allocation2 + $0x18] sm:$0xff] 0.0
    $region21: #{tpu_custom_call.1} parent=1 // pred_fallthru
      _
    %v54 = vld [vmem:[#allocation3] sm:$0xff]
    %v55 = vld [vmem:[#allocation3 + $0x8] sm:$0xff]
    %v56 = vld [vmem:[#allocation3 + $0x10] sm:$0xff]
    %v57 = vld [vmem:[#allocation3 + $0x18] sm:$0xff]
    %v58 = vld [vmem:[#allocation6] sm:$0xff]
    %v59 = vld [vmem:[#allocation6 + $0x8] sm:$0xff]
    %v60 = vld [vmem:[#allocation6 + $0x10] sm:$0xff]
    %v61 = vld [vmem:[#allocation6 + $0x18] sm:$0xff]
    %v62 = vlog2.pop %v54
    %v63 = vmul.f32 %v62, 0.6931472
    %v64 = vlog2.pop %v55
    %v65 = vmul.f32 %v64, 0.6931472
    %v66 = vlog2.pop %v56
    %v67 = vmul.f32 %v66, 0.6931472
    %v68 = vlog2.pop %v57
    %v69 = vmul.f32 %v68, 0.6931472
    %v70 = vmax.f32 %v63, -100.0
    %v71 = vmax.f32 %v65, -100.0
    %v72 = vmax.f32 %v67, -100.0
    %v73 = vmax.f32 %v69, -100.0
    %v74 = vsub.f32 0.0, %v54
    %v75 = vsub.f32 0.0, %v55
    %v76 = vsub.f32 0.0, %v56
    %v77 = vsub.f32 0.0, %v57
    %v78 = vadd.f32 %v74, 1.0
    %v79 = vlog2.pop %v78
    %v80 = vmul.f32 %v79, 0.6931472
    %v81 = vmul.f32 -0.5, %v74
    %v82 = vadd.f32 %v81, 1.0
    %v83 = vmul.f32 %v82, %v74
    %v84 = vand.u32 2147483647, %v74
    %vm85 = vcmp.lt.f32.partialorder %v84, 0.0004427343
    %v86 = vsel %vm85, %v83, %v80
    %v87 = vadd.f32 %v75, 1.0
    %v88 = vlog2.pop %v87
    %v89 = vmul.f32 %v88, 0.6931472
    %v90 = vmul.f32 -0.5, %v75
    %v91 = vadd.f32 %v90, 1.0
    %v92 = vmul.f32 %v91, %v75
    %v93 = vand.u32 2147483647, %v75
    %vm94 = vcmp.lt.f32.partialorder %v93, 0.0004427343
    %v95 = vsel %vm94, %v92, %v89
    %v96 = vadd.f32 %v76, 1.0
    %v97 = vlog2.pop %v96
    %v98 = vmul.f32 %v97, 0.6931472
    %v99 = vmul.f32 -0.5, %v76
    %v100 = vadd.f32 %v99, 1.0
    %v101 = vmul.f32 %v100, %v76
    %v102 = vand.u32 2147483647, %v76
    %vm103 = vcmp.lt.f32.partialorder %v102, 0.0004427343
    %v104 = vsel %vm103, %v101, %v98
    %v105 = vadd.f32 %v77, 1.0
    %v106 = vlog2.pop %v105
    %v107 = vmul.f32 %v106, 0.6931472
    %v108 = vmul.f32 -0.5, %v77
    %v109 = vadd.f32 %v108, 1.0
    %v110 = vmul.f32 %v109, %v77
    %v111 = vand.u32 2147483647, %v77
    %vm112 = vcmp.lt.f32.partialorder %v111, 0.0004427343
    %v113 = vsel %vm112, %v110, %v107
    %v114 = vmax.f32 %v86, -100.0
    %v115 = vmax.f32 %v95, -100.0
    %v116 = vmax.f32 %v104, -100.0
    %v117 = vmax.f32 %v113, -100.0
    %v118 = vsub.f32 %v70, %v114
    %v119 = vsub.f32 %v71, %v115
    %v120 = vsub.f32 %v72, %v116
    %v121 = vsub.f32 %v73, %v117
    %v122 = vmul.f32 %v58, %v118
    %v123 = vmul.f32 %v59, %v119
    %v124 = vmul.f32 %v60, %v120
    %v125 = vmul.f32 %v61, %v121
    %v126 = vadd.f32 %v114, %v122
    %v127 = vadd.f32 %v115, %v123
    %v128 = vadd.f32 %v116, %v124
    %v129 = vadd.f32 %v117, %v125
    %v130 = vadd.f32 %v126, 0.0
    %v131 = vadd.f32 %v127, 0.0
    %v132 = vadd.f32 %v128, 0.0
    %v133 = vadd.f32 %v129, 0.0
    %v134 = vld [vmem:[#allocation2] sm:$0xff]
    %v135 = vld [vmem:[#allocation2 + $0x8] sm:$0xff]
    %v136 = vld [vmem:[#allocation2 + $0x10] sm:$0xff]
    %v137 = vld [vmem:[#allocation2 + $0x18] sm:$0xff]
    %v138 = vadd.f32 %v134, %v130
    %v139 = vadd.f32 %v135, %v131
    %v140 = vadd.f32 %v136, %v132
    %v141 = vadd.f32 %v137, %v133
    %142 = vst [vmem:[#allocation2] sm:$0xff] %v138
    %143 = vst [vmem:[#allocation2 + $0x8] sm:$0xff] %v139
    %144 = vst [vmem:[#allocation2 + $0x10] sm:$0xff] %v140
    %145 = vst [vmem:[#allocation2 + $0x18] sm:$0xff] %v141
    // Predicated region
    $region22: #{tpu_custom_call.1} parent=1 // pred_check
      %p146 = pneg %p46
    $region23: #{tpu_custom_call.1} parent=1 // pred_check_branch
      %148 = sbr.rel (%p146) target = $region25
    $region24: #{tpu_custom_call.1} parent=1 // pred_region
      %v149 = vld [vmem:[#allocation2] sm:$0xff]
      %v150 = vld [vmem:[#allocation2 + $0x8] sm:$0xff]
      %v151 = vld [vmem:[#allocation2 + $0x10] sm:$0xff]
      %v152 = vld [vmem:[#allocation2 + $0x18] sm:$0xff]
      %v153 = vadd.f32 %v149, %v150
      %v154 = vadd.f32 %v153, %v151
      %v155 = vadd.f32 %v154, %v152
      %156 = vadd.xlane.f32.xlu0 %v155
      %v157 = vpop.xlane.xlu0 %156
      %v158 = vrot.slane %v157, 4
      %v159 = vadd.f32 %v157, %v158
      %v160 = vrot.slane %v159, 2
      %v161 = vadd.f32 %v159, %v160
      %v162 = vrot.slane %v161, 1
      %v163 = vadd.f32 %v161, %v162
      %s164 = vtos %v163
      %v165 = vlaneseq
      %v166 = vshrl.u32 %v165, 7
      %v167 = vlaneseq
      %v168 = vand.u32 %v167, 127
      %vm169 = vcmp.eq.s32.totalorder %v166, 0
      %vm170 = vcmp.eq.s32.totalorder %v168, 0
      %vm171 = vmand %vm169, %vm170
      %v172 = vstv %s164
      %v173 = vsel %vm171, %v172, 0.0
      %174 = vst [vmem:[#allocation8] sm:$0xff] %v173
    $region25: #{tpu_custom_call.1} parent=1 // pred_fallthru
      _
    // Predicated region
    $region26: #{tpu_custom_call.1} parent=1 // pred_check
      _
    $region27: #{tpu_custom_call.1} parent=1 // pred_check_branch
      %176 = sbr.rel (0) target = $region29
    $region28: #{tpu_custom_call.1} parent=1 // pred_region
      %s178 = ssub.s32 128, 128
      %179 = vsyncadd [#allocation5], %s178
      %s181 = sshll.u32 [#allocation8], 4
      %s182 = int_to_ptr.vmem [resolvable:$true] %s181
      %184 = dma.vmem_to_hbm [thread:$0]  %s182, 128, %s2, [#allocation5]
    $region29: #{tpu_custom_call.1} parent=1 // pred_fallthru
      _
    // Predicated region
    $region30: #{tpu_custom_call.1} parent=1 // pred_check
      _
    $region31: #{tpu_custom_call.1} parent=1 // pred_check_branch
      %186 = sbr.rel (0) target = $region33
    $region32: #{tpu_custom_call.1} parent=1 // pred_region
      %187 = dma.done [#allocation5], 128
    $region33: #{tpu_custom_call.1} parent=1 // pred_fallthru
      _
    %188 = vsyncpa [#allocation4], 1
    %189 = vsyncpa [#allocation7], 1
    %190 = vsyncpa [#allocation5], 1

</llo_original>
